<compile_context>
chip_gen: v7x
topology: tpu7x:2x2x1
jax: 0.10.0
libtpu: 0.0.40
codegen_flags: <defaults>
</compile_context>

<pallas_src>
import math

import jax
import jax.numpy as jnp
from jax.experimental import pallas as pl
from jax.experimental.pallas import tpu as pltpu

# --- small, module-consistent config ---------------------------------------
BATCH = 2          # batch_size
SEQ = 16           # sequence length of en_output
EMB = 128          # Embedding_size
VOCAB = 256        # len_vocab
MAX_MASK = 4       # max_mask
LN_EPS = 1e-5      # nn.LayerNorm default eps

_INV_SQRT2 = 0.7071067811865476
_ERF_P = 0.3275911
# Abramowitz & Stegun 7.1.26 coefficients with the GELU 0.5 factor folded in.
_C1, _C2, _C3, _C4, _C5 = (0.127414796, -0.142248368, 0.7107068705,
                           -0.7265760135, 0.5307027145)


def _recip(x):
    """1/x: EUP approx reciprocal + one Newton step (near-f32 accuracy)."""
    r = pl.reciprocal(x, approx=True)
    return r * (2.0 - x * r)


def _gelu(x):
    """Exact-erf GELU via A&S 7.1.26 (~1.5e-7 abs err), VALU-trimmed.

    gelu(x) = x * Phi(x), Phi(x) = 0.5*(1 + erf(x/sqrt(2))).
    For z >= 0: 0.5*(1 - erf(z)) = 0.5*poly(t)*exp(-z^2); symmetry gives the
    z < 0 branch with a single select, and 0.5 is folded into the coefficients.
    """
    z = x * _INV_SQRT2
    az = jnp.abs(z)
    t = _recip(1.0 + _ERF_P * az)
    half_poly = ((((_C5 * t + _C4) * t + _C3) * t + _C2) * t + _C1) * t
    q = half_poly * jnp.exp(-z * z)            # = 0.5*(1 - erf(|z|))
    cdf = jnp.where(x >= 0.0, 1.0 - q, q)      # Phi(x)
    return x * cdf


# --- Pallas kernel: gather -> linear_a -> gelu -> LN -> linear_b -> softmax --
def mlm_kernel(pos_ref,    # [NTOK, 1] i32 flat row indices into en_flat (VMEM)
               en_ref,     # [B*S, E] f32 (bulk-DMA'd to VMEM by the pipeline)
               wa_ref,     # [E, E]   f32 (linear_a weight, pre-transposed)
               pgb_ref,    # [8, E]   f32 packed: row0=ba, row1=gamma, row2=beta
               wb_ref,     # [E, V]   f32 (linear_b weight, pre-transposed)
               o_ref):     # [NTOK, V] f32 softmax probabilities
    n_tok = pos_ref.shape[0]
    n_rows = en_ref.shape[0]

    # ---- fused gather: one-hot row-select on the MXU (exact: 0/1 weights) ----
    col = jax.lax.broadcasted_iota(jnp.int32, (n_tok, n_rows), 1)
    onehot = (col == pos_ref[...]).astype(jnp.float32)        # [M, B*S]
    x = jnp.dot(onehot, en_ref[...],
                preferred_element_type=jnp.float32)            # [M, E]

    ba = pgb_ref[0:1, :]
    gamma = pgb_ref[1:2, :]
    beta = pgb_ref[2:3, :]

    # linear_a + GELU
    h = jnp.dot(x, wa_ref[...], preferred_element_type=jnp.float32) + ba
    h = _gelu(h)

    # LayerNorm over last dim (biased variance, eps inside rsqrt — torch default)
    mean = jnp.mean(h, axis=-1, keepdims=True)
    var = jnp.mean(jnp.square(h - mean), axis=-1, keepdims=True)
    h = (h - mean) * jax.lax.rsqrt(var + LN_EPS)
    h = h * gamma + beta

    # linear_b (no bias) + softmax over vocab
    logits = jnp.dot(h, wb_ref[...], preferred_element_type=jnp.float32)  # [M, V]
    mx = jnp.max(logits, axis=-1, keepdims=True)
    e = jnp.exp(logits - mx)
    o_ref[...] = e * _recip(jnp.sum(e, axis=-1, keepdims=True))


def mlm_forward(en_output, masked_position, params):
    """Full MLM.forward: fused gather + head in a single pallas_call."""
    B, S, E = en_output.shape
    MM = masked_position.shape[1]
    NTOK = B * MM
    V = params["wb"].shape[1]

    en_flat = en_output.reshape(B * S, E)          # free reshape (contiguous)

    # Flat, clamped row indices (clamp guards against OOB / padding sentinels
    # now that the gather is in-VMEM rather than a bounds-checked DMA).
    pos = jnp.clip(masked_position.astype(jnp.int32), 0, S - 1)
    flat_pos = (pos + jnp.arange(B, dtype=jnp.int32)[:, None] * S).reshape(NTOK, 1)

    # Pack ba / gamma / beta into one aligned (8, E) tile -> single prologue DMA.
    packed = jnp.zeros((8, E), jnp.float32)
    packed = packed.at[0].set(params["ba"][0])
    packed = packed.at[1].set(params["gamma"][0])
    packed = packed.at[2].set(params["beta"][0])

    probs = pl.pallas_call(
        mlm_kernel,
        out_shape=jax.ShapeDtypeStruct((NTOK, V), jnp.float32),
        grid=(1,),
        in_specs=[
            pl.BlockSpec((NTOK, 1), lambda i: (0, 0)),     # flat positions
            pl.BlockSpec((B * S, E), lambda i: (0, 0)),    # en_flat (16 KiB)
            pl.BlockSpec((E, E), lambda i: (0, 0)),        # wa
            pl.BlockSpec((8, E), lambda i: (0, 0)),        # packed ba/gamma/beta
            pl.BlockSpec((E, V), lambda i: (0, 0)),        # wb
        ],
        out_specs=pl.BlockSpec((NTOK, V), lambda i: (0, 0)),
        compiler_params=pltpu.CompilerParams(
            dimension_semantics=("arbitrary",)),
    )(flat_pos, en_flat, params["wa"], packed, params["wb"])

    # TODO(synk): for production shapes (V~30k, many masked tokens) add a vocab
    # grid axis with a two-pass softmax and a parallel token axis for v7x.
    return probs.reshape(B, MM, V)


# --- pure-JAX reference for a sanity check ----------------------------------
def mlm_reference(en_output, masked_position, params):
    gathered = jnp.take_along_axis(en_output, masked_position[:, :, None], axis=1)
    h = gathered @ params["wa"] + params["ba"][0]
    h = h * 0.5 * (1.0 + jax.scipy.special.erf(h / math.sqrt(2.0)))
    mean = jnp.mean(h, axis=-1, keepdims=True)
    var = jnp.mean(jnp.square(h - mean), axis=-1, keepdims=True)
    h = (h - mean) / jnp.sqrt(var + LN_EPS)
    h = h * params["gamma"][0] + params["beta"][0]
    logits = h @ params["wb"]
    return jax.nn.softmax(logits, axis=-1)


if __name__ == "__main__":
    key = jax.random.PRNGKey(0)
    k1, k2, k3, k4, k5, k6, k7 = jax.random.split(key, 7)

    en_output = jax.random.normal(k1, (BATCH, SEQ, EMB), jnp.float32)
    masked_position = jax.random.randint(k2, (BATCH, MAX_MASK), 0, SEQ, jnp.int32)

    # Deterministic parameter init (shapes from the module's __init__).
    params = dict(
        wa=jax.random.normal(k3, (EMB, EMB), jnp.float32) / math.sqrt(EMB),
        ba=0.02 * jax.random.normal(k4, (1, EMB), jnp.float32),
        gamma=1.0 + 0.1 * jax.random.normal(k5, (1, EMB), jnp.float32),
        beta=0.1 * jax.random.normal(k6, (1, EMB), jnp.float32),
        wb=jax.random.normal(k7, (EMB, VOCAB), jnp.float32) / math.sqrt(EMB),
    )

    out = mlm_forward(en_output, masked_position, params)
    out = jax.block_until_ready(out)

    ref = mlm_reference(en_output, masked_position, params)

    assert out.shape == (BATCH, MAX_MASK, VOCAB)
    assert bool(jnp.allclose(jnp.sum(out, axis=-1), 1.0, atol=1e-4))
    assert bool(jnp.allclose(out, ref, atol=1e-4, rtol=1e-3))
    print("KERNEL_OK")
</pallas_src>

<mosaic_0001>
module attributes {stable_mosaic.version = 11 : i64} {
  func.func @mlm_kernel(%arg0: i32, %arg1: memref<8x1xi32, #tpu.memory_space<vmem>>, %arg2: memref<32x128xf32, #tpu.memory_space<vmem>>, %arg3: memref<128x128xf32, #tpu.memory_space<vmem>>, %arg4: memref<8x128xf32, #tpu.memory_space<vmem>>, %arg5: memref<128x256xf32, #tpu.memory_space<vmem>>, %arg6: memref<8x256xf32, #tpu.memory_space<vmem>>) attributes {dimension_semantics = [#tpu.dimension_semantics<arbitrary>], iteration_bounds = array<i64: 1>, scalar_prefetch = 0 : i64, scratch_operands = 0 : i64, tpu.core_type = #tpu.core_type<tc>, window_params = [{pipeline_mode = #tpu.pipeline_mode<synchronous>, transform_indices = @transform_0, window_bounds = array<i64: 8, 1>}, {pipeline_mode = #tpu.pipeline_mode<synchronous>, transform_indices = @transform_1, window_bounds = array<i64: 32, 128>}, {pipeline_mode = #tpu.pipeline_mode<synchronous>, transform_indices = @transform_2, window_bounds = array<i64: 128, 128>}, {pipeline_mode = #tpu.pipeline_mode<synchronous>, transform_indices = @transform_3, window_bounds = array<i64: 8, 128>}, {pipeline_mode = #tpu.pipeline_mode<synchronous>, transform_indices = @transform_4, window_bounds = array<i64: 128, 256>}, {pipeline_mode = #tpu.pipeline_mode<synchronous>, transform_indices = @transform_5, window_bounds = array<i64: 8, 256>}]} {
    %0 = tpu.iota {dimensions = array<i32: 1>} : vector<8x32xi32>
    %c0 = arith.constant 0 : index
    %c0_0 = arith.constant 0 : index
    %1 = vector.load %arg1[%c0, %c0_0] : memref<8x1xi32, #tpu.memory_space<vmem>>, vector<8x1xi32>
    %2 = vector.broadcast %1 : vector<8x1xi32> to vector<8x32xi32>
    %3 = arith.cmpi eq, %0, %2 : vector<8x32xi32>
    %4 = arith.extui %3 : vector<8x32xi1> to vector<8x32xi32>
    %5 = arith.sitofp %4 : vector<8x32xi32> to vector<8x32xf32>
    %c0_1 = arith.constant 0 : index
    %c0_2 = arith.constant 0 : index
    %6 = vector.load %arg2[%c0_1, %c0_2] : memref<32x128xf32, #tpu.memory_space<vmem>>, vector<32x128xf32>
    %cst = arith.constant dense<0.000000e+00> : vector<8x128xf32>
    %7 = tpu.matmul %5, %6, %cst {dimension_numbers = #tpu.dot_dimension_numbers<[1], [0], [0], [1], [0, 0, 1, 1], [], []>} : vector<8x32xf32>, vector<32x128xf32>, vector<8x128xf32> -> vector<8x128xf32>
    %c0_3 = arith.constant 0 : index
    %c0_4 = arith.constant 0 : index
    %8 = vector.load %arg4[%c0_3, %c0_4] : memref<8x128xf32, #tpu.memory_space<vmem>>, vector<1x128xf32>
    %c1 = arith.constant 1 : index
    %c0_5 = arith.constant 0 : index
    %9 = vector.load %arg4[%c1, %c0_5] : memref<8x128xf32, #tpu.memory_space<vmem>>, vector<1x128xf32>
    %c2 = arith.constant 2 : index
    %c0_6 = arith.constant 0 : index
    %10 = vector.load %arg4[%c2, %c0_6] : memref<8x128xf32, #tpu.memory_space<vmem>>, vector<1x128xf32>
    %c0_7 = arith.constant 0 : index
    %c0_8 = arith.constant 0 : index
    %11 = vector.load %arg3[%c0_7, %c0_8] : memref<128x128xf32, #tpu.memory_space<vmem>>, vector<128x128xf32>
    %cst_9 = arith.constant dense<0.000000e+00> : vector<8x128xf32>
    %12 = tpu.matmul %7, %11, %cst_9 {dimension_numbers = #tpu.dot_dimension_numbers<[1], [0], [0], [1], [0, 0, 1, 1], [], []>} : vector<8x128xf32>, vector<128x128xf32>, vector<8x128xf32> -> vector<8x128xf32>
    %13 = vector.broadcast %8 : vector<1x128xf32> to vector<8x128xf32>
    %14 = arith.addf %12, %13 : vector<8x128xf32>
    %cst_10 = arith.constant 0.707106769 : f32
    %15 = vector.broadcast %cst_10 : f32 to vector<8x128xf32>
    %16 = arith.mulf %14, %15 : vector<8x128xf32>
    %17 = math.absf %16 : vector<8x128xf32>
    %cst_11 = arith.constant 0.327591091 : f32
    %18 = vector.broadcast %cst_11 : f32 to vector<8x128xf32>
    %19 = arith.mulf %18, %17 : vector<8x128xf32>
    %cst_12 = arith.constant 1.000000e+00 : f32
    %20 = vector.broadcast %cst_12 : f32 to vector<8x128xf32>
    %21 = arith.addf %20, %19 : vector<8x128xf32>
    %22 = tpu.reciprocal %21 {approx = true} : vector<8x128xf32> -> vector<8x128xf32>
    %23 = arith.mulf %21, %22 : vector<8x128xf32>
    %cst_13 = arith.constant 2.000000e+00 : f32
    %24 = vector.broadcast %cst_13 : f32 to vector<8x128xf32>
    %25 = arith.subf %24, %23 : vector<8x128xf32>
    %26 = arith.mulf %22, %25 : vector<8x128xf32>
    %cst_14 = arith.constant 0.53070271 : f32
    %27 = vector.broadcast %cst_14 : f32 to vector<8x128xf32>
    %28 = arith.mulf %27, %26 : vector<8x128xf32>
    %cst_15 = arith.constant -0.72657603 : f32
    %29 = vector.broadcast %cst_15 : f32 to vector<8x128xf32>
    %30 = arith.addf %28, %29 : vector<8x128xf32>
    %31 = arith.mulf %30, %26 : vector<8x128xf32>
    %cst_16 = arith.constant 0.710706889 : f32
    %32 = vector.broadcast %cst_16 : f32 to vector<8x128xf32>
    %33 = arith.addf %31, %32 : vector<8x128xf32>
    %34 = arith.mulf %33, %26 : vector<8x128xf32>
    %cst_17 = arith.constant -0.142248362 : f32
    %35 = vector.broadcast %cst_17 : f32 to vector<8x128xf32>
    %36 = arith.addf %34, %35 : vector<8x128xf32>
    %37 = arith.mulf %36, %26 : vector<8x128xf32>
    %cst_18 = arith.constant 0.127414793 : f32
    %38 = vector.broadcast %cst_18 : f32 to vector<8x128xf32>
    %39 = arith.addf %37, %38 : vector<8x128xf32>
    %40 = arith.mulf %39, %26 : vector<8x128xf32>
    %cst_19 = arith.constant 0.000000e+00 : f32
    %41 = vector.broadcast %cst_19 : f32 to vector<8x128xf32>
    %42 = arith.subf %41, %16 : vector<8x128xf32>
    %43 = arith.mulf %42, %16 : vector<8x128xf32>
    %44 = math.exp %43 : vector<8x128xf32>
    %45 = arith.mulf %40, %44 : vector<8x128xf32>
    %cst_20 = arith.constant 0.000000e+00 : f32
    %46 = vector.broadcast %cst_20 : f32 to vector<8x128xf32>
    %47 = arith.cmpf oge, %14, %46 : vector<8x128xf32>
    %cst_21 = arith.constant 1.000000e+00 : f32
    %48 = vector.broadcast %cst_21 : f32 to vector<8x128xf32>
    %49 = arith.subf %48, %45 : vector<8x128xf32>
    %50 = arith.select %47, %49, %45 : vector<8x128xi1>, vector<8x128xf32>
    %51 = arith.mulf %14, %50 : vector<8x128xf32>
    %cst_22 = arith.constant dense<0.000000e+00> : vector<8xf32>
    %52 = vector.multi_reduction <add>, %51, %cst_22 [1] : vector<8x128xf32> to vector<8xf32>
    %53 = vector.shape_cast %52 : vector<8xf32> to vector<8x1xf32>
    %cst_23 = arith.constant 1.280000e+02 : f32
    %54 = vector.broadcast %cst_23 : f32 to vector<8x1xf32>
    %55 = arith.divf %53, %54 : vector<8x1xf32>
    %56 = vector.broadcast %55 : vector<8x1xf32> to vector<8x128xf32>
    %57 = arith.subf %51, %56 : vector<8x128xf32>
    %58 = arith.mulf %57, %57 : vector<8x128xf32>
    %cst_24 = arith.constant dense<0.000000e+00> : vector<8xf32>
    %59 = vector.multi_reduction <add>, %58, %cst_24 [1] : vector<8x128xf32> to vector<8xf32>
    %60 = vector.shape_cast %59 : vector<8xf32> to vector<8x1xf32>
    %cst_25 = arith.constant 1.280000e+02 : f32
    %61 = vector.broadcast %cst_25 : f32 to vector<8x1xf32>
    %62 = arith.divf %60, %61 : vector<8x1xf32>
    %63 = vector.broadcast %55 : vector<8x1xf32> to vector<8x128xf32>
    %64 = arith.subf %51, %63 : vector<8x128xf32>
    %cst_26 = arith.constant 9.99999974E-6 : f32
    %65 = vector.broadcast %cst_26 : f32 to vector<8x1xf32>
    %66 = arith.addf %62, %65 : vector<8x1xf32>
    %67 = math.rsqrt %66 : vector<8x1xf32>
    %68 = vector.broadcast %67 : vector<8x1xf32> to vector<8x128xf32>
    %69 = arith.mulf %64, %68 : vector<8x128xf32>
    %70 = vector.broadcast %9 : vector<1x128xf32> to vector<8x128xf32>
    %71 = arith.mulf %69, %70 : vector<8x128xf32>
    %72 = vector.broadcast %10 : vector<1x128xf32> to vector<8x128xf32>
    %73 = arith.addf %71, %72 : vector<8x128xf32>
    %c0_27 = arith.constant 0 : index
    %c0_28 = arith.constant 0 : index
    %74 = vector.load %arg5[%c0_27, %c0_28] : memref<128x256xf32, #tpu.memory_space<vmem>>, vector<128x256xf32>
    %cst_29 = arith.constant dense<0.000000e+00> : vector<8x256xf32>
    %75 = tpu.matmul %73, %74, %cst_29 {dimension_numbers = #tpu.dot_dimension_numbers<[1], [0], [0], [1], [0, 0, 1, 1], [], []>} : vector<8x128xf32>, vector<128x256xf32>, vector<8x256xf32> -> vector<8x256xf32>
    %cst_30 = arith.constant dense<0xFF800000> : vector<8xf32>
    %76 = vector.multi_reduction <maximumf>, %75, %cst_30 [1] : vector<8x256xf32> to vector<8xf32>
    %77 = vector.shape_cast %76 : vector<8xf32> to vector<8x1xf32>
    %78 = vector.broadcast %77 : vector<8x1xf32> to vector<8x256xf32>
    %79 = arith.subf %75, %78 : vector<8x256xf32>
    %80 = math.exp %79 : vector<8x256xf32>
    %cst_31 = arith.constant dense<0.000000e+00> : vector<8xf32>
    %81 = vector.multi_reduction <add>, %80, %cst_31 [1] : vector<8x256xf32> to vector<8xf32>
    %82 = vector.shape_cast %81 : vector<8xf32> to vector<8x1xf32>
    %83 = tpu.reciprocal %82 {approx = true} : vector<8x1xf32> -> vector<8x1xf32>
    %84 = arith.mulf %82, %83 : vector<8x1xf32>
    %cst_32 = arith.constant 2.000000e+00 : f32
    %85 = vector.broadcast %cst_32 : f32 to vector<8x1xf32>
    %86 = arith.subf %85, %84 : vector<8x1xf32>
    %87 = arith.mulf %83, %86 : vector<8x1xf32>
    %88 = vector.broadcast %87 : vector<8x1xf32> to vector<8x256xf32>
    %89 = arith.mulf %80, %88 : vector<8x256xf32>
    %c0_33 = arith.constant 0 : index
    %c0_34 = arith.constant 0 : index
    %90 = vector.load %arg6[%c0_33, %c0_34] : memref<8x256xf32, #tpu.memory_space<vmem>>, vector<8x256xf32>
    tpu.vector_store %arg6[%c0_33, %c0_34], %89 {strides = array<i32>} : memref<8x256xf32, #tpu.memory_space<vmem>>, vector<8x256xf32>,
    return
  }
  func.func @transform_0(%arg0: i32) -> (i32, i32) {
    %c0_i32 = arith.constant 0 : i32
    %c0_i32_0 = arith.constant 0 : i32
    %c0_i32_1 = arith.constant 0 : i32
    return %c0_i32, %c0_i32_0 : i32, i32
  }
  func.func @transform_1(%arg0: i32) -> (i32, i32) {
    %c0_i32 = arith.constant 0 : i32
    %c0_i32_0 = arith.constant 0 : i32
    %c0_i32_1 = arith.constant 0 : i32
    return %c0_i32, %c0_i32_0 : i32, i32
  }
  func.func @transform_2(%arg0: i32) -> (i32, i32) {
    %c0_i32 = arith.constant 0 : i32
    %c0_i32_0 = arith.constant 0 : i32
    %c0_i32_1 = arith.constant 0 : i32
    return %c0_i32, %c0_i32_0 : i32, i32
  }
  func.func @transform_3(%arg0: i32) -> (i32, i32) {
    %c0_i32 = arith.constant 0 : i32
    %c0_i32_0 = arith.constant 0 : i32
    %c0_i32_1 = arith.constant 0 : i32
    return %c0_i32, %c0_i32_0 : i32, i32
  }
  func.func @transform_4(%arg0: i32) -> (i32, i32) {
    %c0_i32 = arith.constant 0 : i32
    %c0_i32_0 = arith.constant 0 : i32
    %c0_i32_1 = arith.constant 0 : i32
    return %c0_i32, %c0_i32_0 : i32, i32
  }
  func.func @transform_5(%arg0: i32) -> (i32, i32) {
    %c0_i32 = arith.constant 0 : i32
    %c0_i32_0 = arith.constant 0 : i32
    %c0_i32_1 = arith.constant 0 : i32
    return %c0_i32, %c0_i32_0 : i32, i32
  }
}

</mosaic_0001>

<llo_original>
// kernel: tpu_custom_call.1
$region0: #{tpu_custom_call.1}
  #allocation0 [shape = 'u32[]', space=smem, size = 0x4, offset = 0x4, fixed_abs, tag = 'smem constant byte address 0x4 - core index']
  #allocation1 [shape = 'u32[144,128]{1,0:T(1,128)}', space=vmem, size = 0x12000, scoped, tag = 'internal scratch']
  %s0 = inlined_call_operand.vmem [shape: s32[8,1], index: 0, kind: input, shape index: {}]
  %s1 = inlined_call_operand.hbm [shape: f32[32,128], index: 1, kind: input, shape index: {}]
  %s2 = inlined_call_operand.hbm [shape: f32[128,128], index: 2, kind: input, shape index: {}]
  %s3 = inlined_call_operand.vmem [shape: f32[8,128], index: 3, kind: input, shape index: {}]
  %s4 = inlined_call_operand.hbm [shape: f32[128,256], index: 4, kind: input, shape index: {}]
  %s5 = inlined_call_operand.hbm [shape: f32[8,256], index: 5, kind: output, shape index: {}]
  %s6 = sld [smem:[#allocation0]]
  $region42: #{tpu_custom_call.1} parent=0
    _
  %s8 = ssub.s32 1, %s6
  %s9 = scalar_select 0, %s8, %s6
  $region1: #{tpu_custom_call.1} parent=0
    #allocation2 [shape = 'u8[16384]{0}', space=vmem, size = 0x4000, scoped, tag = 'input window, operand 1, single buffered']
    #allocation3 [shape = 's32[1]{0}', space=sflag, size = 0x4, scoped, tag = 'scoped memory for tpu_custom_call.1']
    #allocation4 [shape = 's32[1]{0}', space=sflag, size = 0x4, scoped, tag = 'scoped memory for tpu_custom_call.1']
    #allocation5 [shape = 'u8[65536]{0}', space=vmem, size = 0x10000, scoped, tag = 'input window, operand 2, single buffered']
    #allocation6 [shape = 's32[1]{0}', space=sflag, size = 0x4, scoped, tag = 'scoped memory for tpu_custom_call.1']
    #allocation7 [shape = 'u8[131072]{0}', space=vmem, size = 0x20000, scoped, tag = 'input window, operand 4, single buffered']
    #allocation8 [shape = 'u8[8192]{0}', space=vmem, size = 0x2000, scoped, tag = 'output window, operand 0, single buffered']
    %10 = vsyncpa [#allocation3], 0
    %11 = vsyncpa [#allocation6], 0
    %12 = vsyncpa [#allocation4], 0
    // Predicated region
    $region2: #{tpu_custom_call.1} parent=1 // pred_check
      _
    $region3: #{tpu_custom_call.1} parent=1 // pred_check_branch
      %14 = sbr.rel (0) target = $region5
    $region4: #{tpu_custom_call.1} parent=1 // pred_region
      _
    $region5: #{tpu_custom_call.1} parent=1 // pred_fallthru
      _
    // Predicated region
    $region6: #{tpu_custom_call.1} parent=1 // pred_check
      _
    $region7: #{tpu_custom_call.1} parent=1 // pred_check_branch
      %16 = sbr.rel (0) target = $region9
    $region8: #{tpu_custom_call.1} parent=1 // pred_region
      %s18 = ssub.s32 512, 512
      %19 = vsyncadd [#allocation3], %s18
      %s20 = sshll.u32 [#allocation2], 4
      %s21 = int_to_ptr.vmem [resolvable:$true] %s20
      %26 = dma.hbm_to_vmem [thread:$0]  %s1, 512, %s21, [#allocation3], 128, 128, 8
    $region9: #{tpu_custom_call.1} parent=1 // pred_fallthru
      _
    // Predicated region
    $region10: #{tpu_custom_call.1} parent=1 // pred_check
      _
    $region11: #{tpu_custom_call.1} parent=1 // pred_check_branch
      %28 = sbr.rel (0) target = $region13
    $region12: #{tpu_custom_call.1} parent=1 // pred_region
      %s30 = ssub.s32 2048, 2048
      %31 = vsyncadd [#allocation6], %s30
      %s32 = sshll.u32 [#allocation5], 4
      %s33 = int_to_ptr.vmem [resolvable:$true] %s32
      %38 = dma.hbm_to_vmem [thread:$0]  %s2, 2048, %s33, [#allocation6], 128, 128, 8
    $region13: #{tpu_custom_call.1} parent=1 // pred_fallthru
      _
    // Predicated region
    $region14: #{tpu_custom_call.1} parent=1 // pred_check
      _
    $region15: #{tpu_custom_call.1} parent=1 // pred_check_branch
      %40 = sbr.rel (0) target = $region17
    $region16: #{tpu_custom_call.1} parent=1 // pred_region
      _
    $region17: #{tpu_custom_call.1} parent=1 // pred_fallthru
      _
    // Predicated region
    $region18: #{tpu_custom_call.1} parent=1 // pred_check
      _
    $region19: #{tpu_custom_call.1} parent=1 // pred_check_branch
      %42 = sbr.rel (0) target = $region21
    $region20: #{tpu_custom_call.1} parent=1 // pred_region
      %s44 = ssub.s32 4096, 4096
      %45 = vsyncadd [#allocation6], %s44
      %s46 = sshll.u32 [#allocation7], 4
      %s47 = int_to_ptr.vmem [resolvable:$true] %s46
      %52 = dma.hbm_to_vmem [thread:$0]  %s4, 4096, %s47, [#allocation6], 256, 256, 16
    $region21: #{tpu_custom_call.1} parent=1 // pred_fallthru
      _
    // Predicated region
    $region22: #{tpu_custom_call.1} parent=1 // pred_check
      _
    $region23: #{tpu_custom_call.1} parent=1 // pred_check_branch
      %54 = sbr.rel (0) target = $region25
    $region24: #{tpu_custom_call.1} parent=1 // pred_region
      %55 = dma.done [#allocation3], 512
    $region25: #{tpu_custom_call.1} parent=1 // pred_fallthru
      _
    // Predicated region
    $region26: #{tpu_custom_call.1} parent=1 // pred_check
      _
    $region27: #{tpu_custom_call.1} parent=1 // pred_check_branch
      %57 = sbr.rel (0) target = $region29
    $region28: #{tpu_custom_call.1} parent=1 // pred_region
      %58 = dma.done [#allocation6], 2048
    $region29: #{tpu_custom_call.1} parent=1 // pred_fallthru
      _
    // Predicated region
    $region30: #{tpu_custom_call.1} parent=1 // pred_check
      _
    $region31: #{tpu_custom_call.1} parent=1 // pred_check_branch
      %60 = sbr.rel (0) target = $region33
    $region32: #{tpu_custom_call.1} parent=1 // pred_region
      %61 = dma.done [#allocation6], 4096
    $region33: #{tpu_custom_call.1} parent=1 // pred_fallthru
      _
    %v62 = vlaneseq
    %v63 = vand.u32 %v62, 127
    %v64 = vld [vmem:[%s0] sm:$0xff]
    %65 = vset.pattern.permute.xlu0 0
    %66 = vperm.xlu0 %65, %v64
    %v67 = vpop.permute.xlu0 %66
    %vm68 = vcmp.eq.s32.totalorder %v63, %v67
    %v69 = vsel %vm68, 1, 0
    %v70 = vcvt.s32.f32 %v69
    %v71 = vld [vmem:[#allocation2] sm:$0xff]
    %v72 = vld [vmem:[#allocation2 + $0x8] sm:$0xff]
    %v73 = vld [vmem:[#allocation2 + $0x10] sm:$0xff]
    %v74 = vld [vmem:[#allocation2 + $0x18] sm:$0xff]
    %vm75 = vcmask 261120
    %v77 = vsel %vm75, %v70, 0
    %79 = vmatprep.subr.mxu0 0.0
    %80 = vmatpush1.msra.mxu0 %v71
    %81 = vmatprep.subr.mxu0 0.0
    %82 = vmatpush1.msra.mxu0 %v72
    %83 = vmatprep.subr.mxu0 0.0
    %84 = vmatpush1.msra.mxu0 %v73
    %85 = vmatprep.subr.mxu0 0.0
    %86 = vmatpush1.msra.mxu0 %v74
    %87 = vmatprep.subr.mxu0 0.0
    %88 = vmatpush1.msra.mxu0 0.0
    %89 = vmatprep.subr.mxu0 0.0
    %90 = vmatpush1.msra.mxu0 0.0
    %91 = vmatprep.subr.mxu0 0.0
    %92 = vmatpush1.msra.mxu0 0.0
    %93 = vmatprep.subr.mxu0 0.0
    %94 = vmatpush1.msra.mxu0 0.0
    %95 = vmatprep.subr.mxu0 0.0
    %96 = vmatpush1.msra.mxu0 0.0
    %97 = vmatprep.subr.mxu0 0.0
    %98 = vmatpush1.msra.mxu0 0.0
    %99 = vmatprep.subr.mxu0 0.0
    %100 = vmatpush1.msra.mxu0 0.0
    %101 = vmatprep.subr.mxu0 0.0
    %102 = vmatpush1.msra.mxu0 0.0
    %103 = vmatprep.subr.mxu0 0.0
    %104 = vmatpush1.msra.mxu0 0.0
    %105 = vmatprep.subr.mxu0 0.0
    %106 = vmatpush1.msra.mxu0 0.0
    %107 = vmatprep.subr.mxu0 0.0
    %108 = vmatpush1.msra.mxu0 0.0
    %109 = vmatprep.subr.mxu0 0.0
    %110 = vmatpush1.msra.mxu0 0.0
    %111 = vmatprep.subr.mxu0 0.0
    %112 = vmatpush1.msra.mxu0 0.0
    %113 = vmatprep.subr.mxu0 0.0
    %114 = vmatpush1.msra.mxu0 0.0
    %115 = vmatprep.subr.mxu0 0.0
    %116 = vmatpush1.msra.mxu0 0.0
    %117 = vmatprep.subr.mxu0 0.0
    %118 = vmatpush1.msra.mxu0 0.0
    %119 = vmatprep.subr.mxu0 0.0
    %120 = vmatpush1.msra.mxu0 0.0
    %121 = vmatprep.subr.mxu0 0.0
    %122 = vmatpush1.msra.mxu0 0.0
    %123 = vmatprep.subr.mxu0 0.0
    %124 = vmatpush1.msra.mxu0 0.0
    %125 = vmatprep.subr.mxu0 0.0
    %126 = vmatpush1.msra.mxu0 0.0
    %127 = vmatprep.subr.mxu0 0.0
    %128 = vmatpush1.msra.mxu0 0.0
    %129 = vmatprep.subr.mxu0 0.0
    %130 = vmatpush1.msra.mxu0 0.0
    %131 = vmatprep.subr.mxu0 0.0
    %132 = vmatpush1.msra.mxu0 0.0
    %133 = vmatprep.subr.mxu0 0.0
    %134 = vmatpush1.msra.mxu0 0.0
    %135 = vmatprep.subr.mxu0 0.0
    %136 = vmatpush1.msra.mxu0 0.0
    %137 = vmatprep.subr.mxu0 0.0
    %138 = vmatpush1.msra.mxu0 0.0
    %139 = vmatprep.subr.mxu0 0.0
    %140 = vmatpush1.msra.mxu0 0.0
    %141 = vmatprep.subr.mxu0 0.0
    %142 = vmatpush1.msra.mxu0 0.0
    %143 = vmatprep.mubr.f32.mxu0 0.0
    %144 = vmatmul.mubr.f32.gmra.mrb[0].mxu0 %v77
    %v145 = vpop.f32.mrb[0].mxu0
    %v146 = vadd.f32 0.0, %v145
    %v147 = vpop.f32.mrb[0].mxu0
    %148 = vdwg.mxu0
    %v149 = vld [vmem:[%s3] sm:$0x1]
    %v150 = vld [vmem:[%s3 + $0x1] sm:$0x1]
    %v151 = vld [vmem:[%s3 + $0x2] sm:$0x1]
    %v152 = vld [vmem:[#allocation5] sm:$0xff]
    %v153 = vld [vmem:[#allocation5 + $0x8] sm:$0xff]
    %v154 = vld [vmem:[#allocation5 + $0x10] sm:$0xff]
    %v155 = vld [vmem:[#allocation5 + $0x18] sm:$0xff]
    %v156 = vld [vmem:[#allocation5 + $0x20] sm:$0xff]
    %v157 = vld [vmem:[#allocation5 + $0x28] sm:$0xff]
    %v158 = vld [vmem:[#allocation5 + $0x30] sm:$0xff]
    %v159 = vld [vmem:[#allocation5 + $0x38] sm:$0xff]
    %v160 = vld [vmem:[#allocation5 + $0x40] sm:$0xff]
    %v161 = vld [vmem:[#allocation5 + $0x48] sm:$0xff]
    %v162 = vld [vmem:[#allocation5 + $0x50] sm:$0xff]
    %v163 = vld [vmem:[#allocation5 + $0x58] sm:$0xff]
    %v164 = vld [vmem:[#allocation5 + $0x60] sm:$0xff]
    %v165 = vld [vmem:[#allocation5 + $0x68] sm:$0xff]
    %v166 = vld [vmem:[#allocation5 + $0x70] sm:$0xff]
    %v167 = vld [vmem:[#allocation5 + $0x78] sm:$0xff]
    %v168 = vlaneseq
    %v169 = vshrl.u32 %v168, 7
    %v170 = vsub.s32 0, %v169
    %v171 = vrot.slane %v149, %v170
    %172 = vmatprep.subr.mxu0 0.0
    %173 = vmatpush1.msra.mxu0 %v152
    %174 = vmatprep.subr.mxu0 0.0
    %175 = vmatpush1.msra.mxu0 %v153
    %176 = vmatprep.subr.mxu0 0.0
    %177 = vmatpush1.msra.mxu0 %v154
    %178 = vmatprep.subr.mxu0 0.0
    %179 = vmatpush1.msra.mxu0 %v155
    %180 = vmatprep.subr.mxu0 0.0
    %181 = vmatpush1.msra.mxu0 %v156
    %182 = vmatprep.subr.mxu0 0.0
    %183 = vmatpush1.msra.mxu0 %v157
    %184 = vmatprep.subr.mxu0 0.0
    %185 = vmatpush1.msra.mxu0 %v158
    %186 = vmatprep.subr.mxu0 0.0
    %187 = vmatpush1.msra.mxu0 %v159
    %188 = vmatprep.subr.mxu0 0.0
    %189 = vmatpush1.msra.mxu0 %v160
    %190 = vmatprep.subr.mxu0 0.0
    %191 = vmatpush1.msra.mxu0 %v161
    %192 = vmatprep.subr.mxu0 0.0
    %193 = vmatpush1.msra.mxu0 %v162
    %194 = vmatprep.subr.mxu0 0.0
    %195 = vmatpush1.msra.mxu0 %v163
    %196 = vmatprep.subr.mxu0 0.0
    %197 = vmatpush1.msra.mxu0 %v164
    %198 = vmatprep.subr.mxu0 0.0
    %199 = vmatpush1.msra.mxu0 %v165
    %200 = vmatprep.subr.mxu0 0.0
    %201 = vmatpush1.msra.mxu0 %v166
    %202 = vmatprep.subr.mxu0 0.0
    %203 = vmatpush1.msra.mxu0 %v167
    %204 = vmatprep.subr.mxu0 0.0
    %205 = vmatpush1.msra.mxu0 0.0
    %206 = vmatprep.subr.mxu0 0.0
    %207 = vmatpush1.msra.mxu0 0.0
    %208 = vmatprep.subr.mxu0 0.0
    %209 = vmatpush1.msra.mxu0 0.0
    %210 = vmatprep.subr.mxu0 0.0
    %211 = vmatpush1.msra.mxu0 0.0
    %212 = vmatprep.subr.mxu0 0.0
    %213 = vmatpush1.msra.mxu0 0.0
    %214 = vmatprep.subr.mxu0 0.0
    %215 = vmatpush1.msra.mxu0 0.0
    %216 = vmatprep.subr.mxu0 0.0
    %217 = vmatpush1.msra.mxu0 0.0
    %218 = vmatprep.subr.mxu0 0.0
    %219 = vmatpush1.msra.mxu0 0.0
    %220 = vmatprep.subr.mxu0 0.0
    %221 = vmatpush1.msra.mxu0 0.0
    %222 = vmatprep.subr.mxu0 0.0
    %223 = vmatpush1.msra.mxu0 0.0
    %224 = vmatprep.subr.mxu0 0.0
    %225 = vmatpush1.msra.mxu0 0.0
    %226 = vmatprep.subr.mxu0 0.0
    %227 = vmatpush1.msra.mxu0 0.0
    %228 = vmatprep.subr.mxu0 0.0
    %229 = vmatpush1.msra.mxu0 0.0
    %230 = vmatprep.subr.mxu0 0.0
    %231 = vmatpush1.msra.mxu0 0.0
    %232 = vmatprep.subr.mxu0 0.0
    %233 = vmatpush1.msra.mxu0 0.0
    %234 = vmatprep.subr.mxu0 0.0
    %235 = vmatpush1.msra.mxu0 0.0
    %236 = vmatprep.mubr.f32.mxu0 0.0
    %237 = vmatmul.mubr.f32.gmra.mrb[0].mxu0 %v146
    %v238 = vpop.f32.mrb[0].mxu0
    %v239 = vadd.f32 %v171, %v238
    %v240 = vpop.f32.mrb[0].mxu0
    %241 = vdwg.mxu0
    %v242 = vmul.f32 %v239, 0.70710677
    %v243 = vand.u32 2147483647, %v242
    %v244 = vmul.f32 %v243, 0.3275911
    %v245 = vadd.f32 %v244, 1.0
    %v246 = vrcp.pop %v245
    %v247 = vmul.f32 %v245, %v246
    %v248 = vsub.f32 2.0, %v247
    %v249 = vmul.f32 %v246, %v248
    %v250 = vmul.f32 %v249, 0.5307027
    %v251 = vadd.f32 %v250, -0.72657603
    %v252 = vmul.f32 %v251, %v249
    %v253 = vadd.f32 %v252, 0.7107069
    %v254 = vmul.f32 %v253, %v249
    %v255 = vadd.f32 %v254, -0.14224836
    %v256 = vmul.f32 %v255, %v249
    %v257 = vadd.f32 %v256, 0.1274148
    %v258 = vmul.f32 %v257, %v249
    %v259 = vsub.f32 0.0, %v242
    %v260 = vmul.f32 %v259, %v242
    %v261 = vmul.f32 %v260, 1.442695
    %v262 = vpow.pop %v261
    %v263 = vmul.f32 %v258, %v262
    %vm264 = vcmp.ge.f32.partialorder %v239, 0.0
    %v265 = vsub.f32 1.0, %v263
    %v266 = vsel %vm264, %v265, %v263
    %v267 = vmul.f32 %v239, %v266
    %268 = vadd.xlane.f32.xlu0 %v267
    %v269 = vpop.xlane.xlu0 %268
    %v270 = vrcp.pop 128.0
    %v271 = vmul.f32 %v269, %v270
    %v272 = vsub.f32 %v267, %v271
    %v273 = vmul.f32 %v272, %v272
    %274 = vadd.xlane.f32.xlu0 %v273
    %v275 = vpop.xlane.xlu0 %274
    %v276 = vmul.f32 %v275, %v270
    %v277 = vadd.f32 %v276, 1e-05
    %v278 = vrsqrt.pop %v277
    %v279 = vmul.f32 %v272, %v278
    %v280 = vlaneseq
    %v281 = vshrl.u32 %v280, 7
    %v282 = vsub.s32 0, %v281
    %v283 = vrot.slane %v150, %v282
    %v284 = vmul.f32 %v279, %v283
    %v285 = vlaneseq
    %v286 = vshrl.u32 %v285, 7
    %v287 = vsub.s32 0, %v286
    %v288 = vrot.slane %v151, %v287
    %v289 = vadd.f32 %v284, %v288
    %v290 = vld [vmem:[#allocation7] sm:$0xff]
    %v291 = vld [vmem:[#allocation7 + $0x8] sm:$0xff]
    %v292 = vld [vmem:[#allocation7 + $0x10] sm:$0xff]
    %v293 = vld [vmem:[#allocation7 + $0x18] sm:$0xff]
    %v294 = vld [vmem:[#allocation7 + $0x20] sm:$0xff]
    %v295 = vld [vmem:[#allocation7 + $0x28] sm:$0xff]
    %v296 = vld [vmem:[#allocation7 + $0x30] sm:$0xff]
    %v297 = vld [vmem:[#allocation7 + $0x38] sm:$0xff]
    %v298 = vld [vmem:[#allocation7 + $0x40] sm:$0xff]
    %v299 = vld [vmem:[#allocation7 + $0x48] sm:$0xff]
    %v300 = vld [vmem:[#allocation7 + $0x50] sm:$0xff]
    %v301 = vld [vmem:[#allocation7 + $0x58] sm:$0xff]
    %v302 = vld [vmem:[#allocation7 + $0x60] sm:$0xff]
    %v303 = vld [vmem:[#allocation7 + $0x68] sm:$0xff]
    %v304 = vld [vmem:[#allocation7 + $0x70] sm:$0xff]
    %v305 = vld [vmem:[#allocation7 + $0x78] sm:$0xff]
    %v306 = vld [vmem:[#allocation7 + $0x80] sm:$0xff]
    %v307 = vld [vmem:[#allocation7 + $0x88] sm:$0xff]
    %v308 = vld [vmem:[#allocation7 + $0x90] sm:$0xff]
    %v309 = vld [vmem:[#allocation7 + $0x98] sm:$0xff]
    %v310 = vld [vmem:[#allocation7 + $0xa0] sm:$0xff]
    %v311 = vld [vmem:[#allocation7 + $0xa8] sm:$0xff]
    %v312 = vld [vmem:[#allocation7 + $0xb0] sm:$0xff]
    %v313 = vld [vmem:[#allocation7 + $0xb8] sm:$0xff]
    %v314 = vld [vmem:[#allocation7 + $0xc0] sm:$0xff]
    %v315 = vld [vmem:[#allocation7 + $0xc8] sm:$0xff]
    %v316 = vld [vmem:[#allocation7 + $0xd0] sm:$0xff]
    %v317 = vld [vmem:[#allocation7 + $0xd8] sm:$0xff]
    %v318 = vld [vmem:[#allocation7 + $0xe0] sm:$0xff]
    %v319 = vld [vmem:[#allocation7 + $0xe8] sm:$0xff]
    %v320 = vld [vmem:[#allocation7 + $0xf0] sm:$0xff]
    %v321 = vld [vmem:[#allocation7 + $0xf8] sm:$0xff]
    %322 = vmatprep.subr.mxu0 %v291
    %323 = vmatpush1.msra.mxu0 %v290
    %324 = vmatprep.subr.mxu0 %v293
    %325 = vmatpush1.msra.mxu0 %v292
    %326 = vmatprep.subr.mxu0 %v295
    %327 = vmatpush1.msra.mxu0 %v294
    %328 = vmatprep.subr.mxu0 %v297
    %329 = vmatpush1.msra.mxu0 %v296
    %330 = vmatprep.subr.mxu0 %v299
    %331 = vmatpush1.msra.mxu0 %v298
    %332 = vmatprep.subr.mxu0 %v301
    %333 = vmatpush1.msra.mxu0 %v300
    %334 = vmatprep.subr.mxu0 %v303
    %335 = vmatpush1.msra.mxu0 %v302
    %336 = vmatprep.subr.mxu0 %v305
    %337 = vmatpush1.msra.mxu0 %v304
    %338 = vmatprep.subr.mxu0 %v307
    %339 = vmatpush1.msra.mxu0 %v306
    %340 = vmatprep.subr.mxu0 %v309
    %341 = vmatpush1.msra.mxu0 %v308
    %342 = vmatprep.subr.mxu0 %v311
    %343 = vmatpush1.msra.mxu0 %v310
    %344 = vmatprep.subr.mxu0 %v313
    %345 = vmatpush1.msra.mxu0 %v312
    %346 = vmatprep.subr.mxu0 %v315
    %347 = vmatpush1.msra.mxu0 %v314
    %348 = vmatprep.subr.mxu0 %v317
    %349 = vmatpush1.msra.mxu0 %v316
    %350 = vmatprep.subr.mxu0 %v319
    %351 = vmatpush1.msra.mxu0 %v318
    %352 = vmatprep.subr.mxu0 %v321
    %353 = vmatpush1.msra.mxu0 %v320
    %354 = vmatprep.subr.mxu0 0.0
    %355 = vmatpush1.msra.mxu0 0.0
    %356 = vmatprep.subr.mxu0 0.0
    %357 = vmatpush1.msra.mxu0 0.0
    %358 = vmatprep.subr.mxu0 0.0
    %359 = vmatpush1.msra.mxu0 0.0
    %360 = vmatprep.subr.mxu0 0.0
    %361 = vmatpush1.msra.mxu0 0.0
    %362 = vmatprep.subr.mxu0 0.0
    %363 = vmatpush1.msra.mxu0 0.0
    %364 = vmatprep.subr.mxu0 0.0
    %365 = vmatpush1.msra.mxu0 0.0
    %366 = vmatprep.subr.mxu0 0.0
    %367 = vmatpush1.msra.mxu0 0.0
    %368 = vmatprep.subr.mxu0 0.0
    %369 = vmatpush1.msra.mxu0 0.0
    %370 = vmatprep.subr.mxu0 0.0
    %371 = vmatpush1.msra.mxu0 0.0
    %372 = vmatprep.subr.mxu0 0.0
    %373 = vmatpush1.msra.mxu0 0.0
    %374 = vmatprep.subr.mxu0 0.0
    %375 = vmatpush1.msra.mxu0 0.0
    %376 = vmatprep.subr.mxu0 0.0
    %377 = vmatpush1.msra.mxu0 0.0
    %378 = vmatprep.subr.mxu0 0.0
    %379 = vmatpush1.msra.mxu0 0.0
    %380 = vmatprep.subr.mxu0 0.0
    %381 = vmatpush1.msra.mxu0 0.0
    %382 = vmatprep.subr.mxu0 0.0
    %383 = vmatpush1.msra.mxu0 0.0
    %384 = vmatprep.subr.mxu0 0.0
    %385 = vmatpush1.msra.mxu0 0.0
    %386 = vmatprep.mubr.f32.mxu0 0.0
    %387 = vmatmul.mubr.f32.gmra.mrb[0].mxu0 %v289
    %v388 = vpop.f32.mrb[0].mxu0
    %v389 = vadd.f32 0.0, %v388
    %v390 = vpop.f32.mrb[0].mxu0
    %v391 = vadd.f32 0.0, %v390
    %392 = vdwg.mxu0
    %v393 = vmax.f32 %v389, %v391
    %394 = vmax.xlane.f32.xlu0 %v393
    %v395 = vpop.xlane.xlu0 %394
    %v396 = vsub.f32 %v389, %v395
    %v397 = vsub.f32 %v391, %v395
    %v398 = vmul.f32 %v396, 1.442695
    %v399 = vpow.pop %v398
    %v400 = vmul.f32 %v397, 1.442695
    %v401 = vpow.pop %v400
    %v402 = vadd.f32 %v399, %v401
    %403 = vadd.xlane.f32.xlu0 %v402
    %v404 = vpop.xlane.xlu0 %403
    %v405 = vrcp.pop %v404
    %v406 = vmul.f32 %v404, %v405
    %v407 = vsub.f32 2.0, %v406
    %v408 = vmul.f32 %v405, %v407
    %v409 = vmul.f32 %v399, %v408
    %v410 = vmul.f32 %v401, %v408
    %411 = vst [vmem:[#allocation8] sm:$0xff] %v409
    %412 = vst [vmem:[#allocation8 + $0x8] sm:$0xff] %v410
    // Predicated region
    $region34: #{tpu_custom_call.1} parent=1 // pred_check
      _
    $region35: #{tpu_custom_call.1} parent=1 // pred_check_branch
      %414 = sbr.rel (0) target = $region37
    $region36: #{tpu_custom_call.1} parent=1 // pred_region
      %s416 = ssub.s32 256, 256
      %417 = vsyncadd [#allocation4], %s416
      %s419 = sshll.u32 [#allocation8], 4
      %s420 = int_to_ptr.vmem [resolvable:$true] %s419
      %422 = dma.vmem_to_hbm [thread:$0]  %s420, 256, %s5, [#allocation4]
    $region37: #{tpu_custom_call.1} parent=1 // pred_fallthru
      _
    // Predicated region
    $region38: #{tpu_custom_call.1} parent=1 // pred_check
      _
    $region39: #{tpu_custom_call.1} parent=1 // pred_check_branch
      %424 = sbr.rel (0) target = $region41
    $region40: #{tpu_custom_call.1} parent=1 // pred_region
      %425 = dma.done [#allocation4], 256
    $region41: #{tpu_custom_call.1} parent=1 // pred_fallthru
      _
    %426 = vsyncpa [#allocation3], 1
    %427 = vsyncpa [#allocation6], 1
    %428 = vsyncpa [#allocation4], 1

</llo_original>
